<compile_context>
chip_gen: v5e
topology: v5e:2x2
jax: 0.10.0
libtpu: 0.0.40
codegen_flags: <defaults>
</compile_context>

<pallas_src>
import jax
import jax.numpy as jnp
from jax.experimental import pallas as pl
from jax.experimental.pallas import tpu as pltpu


def _round_up(n, m):
    return ((n + m - 1) // m) * m


def _conv_bn_relu_kernel(x_ref, w_ref, scale_ref, shift_ref, o_ref):
    # x_ref:     (K*Cin, tT) bf16  im2col columns for this (batch, time-tile)
    # w_ref:     (Hs, K*Cin) bf16  conv weight with taps folded into the contraction
    # scale_ref: (Hs, 1)     f32   folded BN scale: gamma / sqrt(var + eps)
    # shift_ref: (Hs, 1)     f32   folded BN shift: (conv_bias - mean) * scale + beta
    # o_ref:     (Hs, tT)    f32
    acc = jnp.dot(w_ref[...], x_ref[...], preferred_element_type=jnp.float32)
    y = acc * scale_ref[...] + shift_ref[...]
    o_ref[...] = jnp.maximum(y, jnp.float32(0.0)).astype(o_ref.dtype)


def _conv_bn_relu_dropout_kernel(x_ref, w_ref, scale_ref, shift_ref, m_ref, o_ref):
    # Same as above plus an inverted-dropout multiplier m_ref (Hs, tT) in {0, 1/keep_prob}.
    acc = jnp.dot(w_ref[...], x_ref[...], preferred_element_type=jnp.float32)
    y = acc * scale_ref[...] + shift_ref[...]
    y = jnp.maximum(y, jnp.float32(0.0))
    o_ref[...] = (y * m_ref[...].astype(jnp.float32)).astype(o_ref.dtype)


def conv1d_bn_relu_dropout(x, conv_w, conv_b, bn_gamma, bn_beta, bn_mean,
                           bn_var, *, eps=1e-5, drop_p=0.5, training=False,
                           seed=0):
    """x: (B, Cin, T); conv_w: (H, Cin, K); conv_b / bn_*: (H,).  Returns (B, H, T) f32.

    Causal Conv1d (left pad K-1) + eval-mode BatchNorm1d + ReLU + (inverted) Dropout.
    """
    B, Cin, T = x.shape
    H, Cin_w, K = conv_w.shape
    assert Cin_w == Cin
    Hs = _round_up(H, 8)          # sublane-only padding of the output-channel dim
    KC = K * Cin

    apply_dropout = bool(training) and float(drop_p) > 0.0
    keep_prob = 1.0 - float(drop_p)
    if apply_dropout and keep_prob <= 0.0:
        # PyTorch Dropout(p=1.0) zeroes everything in training mode.
        return jnp.zeros((B, H, T), dtype=jnp.float32)

    # ---- fold conv bias + eval-mode BatchNorm into one per-channel scale/shift ----
    scale = bn_gamma / jnp.sqrt(bn_var + eps)
    shift = (conv_b - bn_mean) * scale + bn_beta
    scale_p = jnp.pad(scale, (0, Hs - H)).reshape(Hs, 1).astype(jnp.float32)
    shift_p = jnp.pad(shift, (0, Hs - H)).reshape(Hs, 1).astype(jnp.float32)

    # ---- weight: (H, Cin, K) -> (Hs, K*Cin): taps folded into a single contraction ----
    w_flat = jnp.transpose(conv_w, (0, 2, 1)).reshape(H, KC)          # [h, k*Cin + c]
    w_flat = jnp.pad(w_flat, ((0, Hs - H), (0, 0))).astype(jnp.bfloat16)

    # ---- im2col in native (B, C, T) layout: causal left pad + K shifted windows ----
    # x_col[b, k*Cin + c, t] = x[b, c, t + k - (K - 1)]  (zero for negative time)
    x_pad = jnp.pad(x, ((0, 0), (0, 0), (K - 1, 0)))
    x_col = jnp.concatenate([x_pad[:, :, k:k + T] for k in range(K)], axis=1)
    x_col = x_col.astype(jnp.bfloat16)                                # (B, K*Cin, T)

    # ---- time tiling: T stays the lane-dense minor dim of both input and output ----
    t_tile = T if T <= 1024 else 1024          # full dim, or a multiple of 128
    nt = pl.cdiv(T, t_tile)

    x_spec = pl.BlockSpec((None, KC, t_tile), lambda b, j: (b, 0, j))
    w_spec = pl.BlockSpec((Hs, KC), lambda b, j: (0, 0))
    s_spec = pl.BlockSpec((Hs, 1), lambda b, j: (0, 0))
    o_spec = pl.BlockSpec((None, Hs, t_tile), lambda b, j: (b, 0, j))

    operands = [x_col, w_flat, scale_p, shift_p]
    in_specs = [x_spec, w_spec, s_spec, s_spec]
    kernel = _conv_bn_relu_kernel
    bytes_accessed = 2 * B * KC * T + 2 * Hs * KC + 8 * Hs + 4 * B * Hs * T

    if apply_dropout:
        keep = jax.random.bernoulli(jax.random.PRNGKey(seed), p=keep_prob,
                                    shape=(B, Hs, T))
        mask = (keep.astype(jnp.float32) * (1.0 / keep_prob)).astype(jnp.bfloat16)
        operands.append(mask)
        in_specs.append(pl.BlockSpec((None, Hs, t_tile), lambda b, j: (b, 0, j)))
        kernel = _conv_bn_relu_dropout_kernel
        bytes_accessed += 2 * B * Hs * T

    cost = pl.CostEstimate(flops=2 * B * T * KC * Hs, transcendentals=0,
                           bytes_accessed=bytes_accessed)

    out_p = pl.pallas_call(
        kernel,
        out_shape=jax.ShapeDtypeStruct((B, Hs, T), jnp.float32),
        grid=(B, nt),
        in_specs=in_specs,
        out_specs=o_spec,
        compiler_params=pltpu.CompilerParams(
            dimension_semantics=("parallel", "parallel")),
        cost_estimate=cost,
    )(*operands)

    # Drop sublane padding (no-op when H is already a multiple of 8).
    return out_p[:, :H, :]


if __name__ == "__main__":
    # Small shapes consistent with the module: X is (batch, input_dim, seq_len).
    B, Cin, T = 2, 4, 16
    H, K = 32, 5
    eps = 1e-5

    key = jax.random.PRNGKey(0)
    kx, kw, kb, kg, kbe, km, kv = jax.random.split(key, 7)

    x = jax.random.normal(kx, (B, Cin, T), dtype=jnp.float32)
    bound = 1.0 / (Cin * K) ** 0.5
    conv_w = jax.random.uniform(kw, (H, Cin, K), minval=-bound, maxval=bound,
                                dtype=jnp.float32)
    conv_b = jax.random.uniform(kb, (H,), minval=-bound, maxval=bound,
                                dtype=jnp.float32)
    bn_gamma = jax.random.uniform(kg, (H,), minval=0.5, maxval=1.5,
                                  dtype=jnp.float32)
    bn_beta = 0.1 * jax.random.normal(kbe, (H,), dtype=jnp.float32)
    bn_mean = 0.1 * jax.random.normal(km, (H,), dtype=jnp.float32)
    bn_var = jax.random.uniform(kv, (H,), minval=0.5, maxval=1.5,
                                dtype=jnp.float32)

    # Eval-mode forward (dropout = identity).
    out_eval = conv1d_bn_relu_dropout(x, conv_w, conv_b, bn_gamma, bn_beta,
                                      bn_mean, bn_var, eps=eps, drop_p=0.5,
                                      training=False)
    out_eval = jax.block_until_ready(out_eval)
    assert out_eval.shape == (B, H, T)

    def reference(x_in, w_in):
        x_p = jnp.pad(x_in, ((0, 0), (0, 0), (K - 1, 0)))
        conv = jax.lax.conv_general_dilated(
            x_p, w_in, window_strides=(1,), padding="VALID",
            dimension_numbers=("NCH", "OIH", "NCH"),
            precision=jax.lax.Precision.HIGHEST)
        conv = conv + conv_b[None, :, None]
        sc = bn_gamma / jnp.sqrt(bn_var + eps)
        r = (conv - bn_mean[None, :, None]) * sc[None, :, None] + bn_beta[None, :, None]
        return jnp.maximum(r, 0.0)

    # Tight check vs a reference fed the same bf16-quantized operands (isolates the
    # intentional bf16 cast of the matmul operands).
    ref_bf16_inputs = reference(x.astype(jnp.bfloat16).astype(jnp.float32),
                                conv_w.astype(jnp.bfloat16).astype(jnp.float32))
    assert jnp.allclose(out_eval, ref_bf16_inputs, atol=1e-3, rtol=1e-3)

    # Loose check vs the true f32 module reference (bf16 operand quantization tolerance).
    ref_f32 = reference(x, conv_w)
    assert jnp.allclose(out_eval, ref_f32, atol=5e-2, rtol=5e-2)

    # Training-mode dropout path: every element must be either dropped (0) or the
    # eval value scaled by exactly 1/(1-p) = 2.
    out_train = conv1d_bn_relu_dropout(x, conv_w, conv_b, bn_gamma, bn_beta,
                                       bn_mean, bn_var, eps=eps, drop_p=0.5,
                                       training=True, seed=123)
    out_train = jax.block_until_ready(out_train)
    assert out_train.shape == (B, H, T)
    ok = jnp.all((out_train == 0.0) |
                 jnp.isclose(out_train, 2.0 * out_eval, rtol=1e-3, atol=1e-5))
    assert bool(ok)
    # Sanity: some (but not all) elements dropped.
    assert bool(jnp.any(out_train == 0.0)) and bool(jnp.any(out_train != 0.0))

    print("KERNEL_OK")
</pallas_src>

<mosaic_0001>
module attributes {stable_mosaic.version = 11 : i64} {
  func.func @_conv_bn_relu_kernel(%arg0: i32, %arg1: i32, %arg2: memref<1x20x16xbf16, #tpu.memory_space<vmem>>, %arg3: memref<32x20xbf16, #tpu.memory_space<vmem>>, %arg4: memref<32x1xf32, #tpu.memory_space<vmem>>, %arg5: memref<32x1xf32, #tpu.memory_space<vmem>>, %arg6: memref<1x32x16xf32, #tpu.memory_space<vmem>>) attributes {dimension_semantics = [#tpu.dimension_semantics<parallel>, #tpu.dimension_semantics<parallel>], iteration_bounds = array<i64: 2, 1>, scalar_prefetch = 0 : i64, scratch_operands = 0 : i64, tpu.core_type = #tpu.core_type<tc>, window_params = [{transform_indices = @transform_0, window_bounds = array<i64: 1, 20, 16>}, {pipeline_mode = #tpu.pipeline_mode<synchronous>, transform_indices = @transform_1, window_bounds = array<i64: 32, 20>}, {pipeline_mode = #tpu.pipeline_mode<synchronous>, transform_indices = @transform_2, window_bounds = array<i64: 32, 1>}, {pipeline_mode = #tpu.pipeline_mode<synchronous>, transform_indices = @transform_3, window_bounds = array<i64: 32, 1>}, {transform_indices = @transform_4, window_bounds = array<i64: 1, 32, 16>}]} {
    %c0 = arith.constant 0 : index
    %c0_0 = arith.constant 0 : index
    %0 = vector.load %arg3[%c0, %c0_0] : memref<32x20xbf16, #tpu.memory_space<vmem>>, vector<32x20xbf16>
    %c0_1 = arith.constant 0 : index
    %c0_2 = arith.constant 0 : index
    %c0_3 = arith.constant 0 : index
    %1 = vector.load %arg2[%c0_1, %c0_2, %c0_3] : memref<1x20x16xbf16, #tpu.memory_space<vmem>>, vector<1x20x16xbf16>
    %2 = vector.shape_cast %1 : vector<1x20x16xbf16> to vector<20x16xbf16>
    %cst = arith.constant dense<0.000000e+00> : vector<32x16xf32>
    %3 = tpu.matmul %0, %2, %cst {dimension_numbers = #tpu.dot_dimension_numbers<[1], [0], [0], [1], [0, 0, 1, 1], [], []>} : vector<32x20xbf16>, vector<20x16xbf16>, vector<32x16xf32> -> vector<32x16xf32>
    %c0_4 = arith.constant 0 : index
    %c0_5 = arith.constant 0 : index
    %4 = vector.load %arg4[%c0_4, %c0_5] : memref<32x1xf32, #tpu.memory_space<vmem>>, vector<32x1xf32>
    %5 = vector.broadcast %4 : vector<32x1xf32> to vector<32x16xf32>
    %6 = arith.mulf %3, %5 : vector<32x16xf32>
    %c0_6 = arith.constant 0 : index
    %c0_7 = arith.constant 0 : index
    %7 = vector.load %arg5[%c0_6, %c0_7] : memref<32x1xf32, #tpu.memory_space<vmem>>, vector<32x1xf32>
    %8 = vector.broadcast %7 : vector<32x1xf32> to vector<32x16xf32>
    %9 = arith.addf %6, %8 : vector<32x16xf32>
    %cst_8 = arith.constant 0.000000e+00 : f32
    %10 = vector.broadcast %cst_8 : f32 to vector<32x16xf32>
    %11 = arith.maximumf %9, %10 : vector<32x16xf32>
    %c0_9 = arith.constant 0 : index
    %c0_10 = arith.constant 0 : index
    %c0_11 = arith.constant 0 : index
    %12 = vector.load %arg6[%c0_9, %c0_10, %c0_11] : memref<1x32x16xf32, #tpu.memory_space<vmem>>, vector<1x32x16xf32>
    %13 = vector.shape_cast %12 : vector<1x32x16xf32> to vector<32x16xf32>
    %14 = vector.shape_cast %11 : vector<32x16xf32> to vector<1x32x16xf32>
    tpu.vector_store %arg6[%c0_9, %c0_10, %c0_11], %14 {strides = array<i32>} : memref<1x32x16xf32, #tpu.memory_space<vmem>>, vector<1x32x16xf32>,
    return
  }
  func.func @transform_0(%arg0: i32, %arg1: i32) -> (i32, i32, i32) {
    %c0_i32 = arith.constant 0 : i32
    %c0_i32_0 = arith.constant 0 : i32
    return %arg0, %c0_i32, %arg1 : i32, i32, i32
  }
  func.func @transform_1(%arg0: i32, %arg1: i32) -> (i32, i32) {
    %c0_i32 = arith.constant 0 : i32
    %c0_i32_0 = arith.constant 0 : i32
    %c0_i32_1 = arith.constant 0 : i32
    return %c0_i32, %c0_i32_0 : i32, i32
  }
  func.func @transform_2(%arg0: i32, %arg1: i32) -> (i32, i32) {
    %c0_i32 = arith.constant 0 : i32
    %c0_i32_0 = arith.constant 0 : i32
    %c0_i32_1 = arith.constant 0 : i32
    return %c0_i32, %c0_i32_0 : i32, i32
  }
  func.func @transform_3(%arg0: i32, %arg1: i32) -> (i32, i32) {
    %c0_i32 = arith.constant 0 : i32
    %c0_i32_0 = arith.constant 0 : i32
    %c0_i32_1 = arith.constant 0 : i32
    return %c0_i32, %c0_i32_0 : i32, i32
  }
  func.func @transform_4(%arg0: i32, %arg1: i32) -> (i32, i32, i32) {
    %c0_i32 = arith.constant 0 : i32
    %c0_i32_0 = arith.constant 0 : i32
    return %arg0, %c0_i32, %arg1 : i32, i32, i32
  }
}

</mosaic_0001>

<llo_original>
// kernel: tpu_custom_call.1
$region0: #{tpu_custom_call.1}
  #allocation0 [shape = 'u32[]', space=smem, size = 0x4, offset = 0x4, fixed_abs, tag = 'smem constant byte address 0x4 - core index']
  #allocation1 [shape = 'u32[72,128]{1,0:T(1,128)}', space=vmem, size = 0x9000, scoped, tag = 'internal scratch']
  %s0 = inlined_call_operand.vmem [shape: bf16[2,20,16], index: 0, kind: input, shape index: {}]
  %s1 = inlined_call_operand.vmem [shape: bf16[32,20], index: 1, kind: input, shape index: {}]
  %s2 = inlined_call_operand.vmem [shape: f32[32,1], index: 2, kind: input, shape index: {}]
  %s3 = inlined_call_operand.vmem [shape: f32[32,1], index: 3, kind: input, shape index: {}]
  %s4 = inlined_call_operand.vmem [shape: f32[2,32,16], index: 4, kind: output, shape index: {}]
  %s5 = sld [smem:[#allocation0]]
  $region49: #{tpu_custom_call.1} parent=0
    _
  %s7 = ssub.s32 1, %s5
  %s8 = scalar_select 0, %s7, %s5
  loop: start=0, step=1, limit=4
  $region2: #{tpu_custom_call.1} parent=0 // loop_pre_header
    _
  $region3: #{tpu_custom_call.1} parent=0 // loop_header
    %s10 = sphi 0, %s14
    %p11 = scmp.ge.s32.totalorder %s10, 4
    %s17 = sphi 0, %s29
    %s18 = sphi 0, %s25
    %s19 = sphi 0, %s17
    %s20 = sphi 0, %s18
    %s21 = sphi 0, %s19
    %s22 = sphi 0, %s20
    %s34 = sphi 0, %s36
    %s37 = sphi 0, %s34
    %s38 = sphi 0, %s37
    %s54 = sphi 0, %s38
    %s58 = sphi 0, %s58
    %s60 = sphi 0, %s58
    %s61 = sphi 0, %s60
    %s75 = sphi 0, %s61
    %s79 = sphi 0, %s79
    %s81 = sphi 0, %s79
    %s82 = sphi 0, %s81
    %s96 = sphi 0, %s82
    %s100 = sphi 0, %s100
    %s102 = sphi 0, %s100
    %s103 = sphi 0, %s102
    %s117 = sphi 0, %s103
    %s125 = sphi 0, %s127
    %s128 = sphi 0, %s125
    %s129 = sphi 0, %s128
    %s145 = sphi 0, %s129
  $region4: #{tpu_custom_call.1} parent=0 // loop_header_branch
    %13 = sbr.rel (%p11) target = $region8
  $region5: #{tpu_custom_call.1} parent=0 // loop_body
    %s15 = ssub.s32 %s10, 1
    %s16 = ssub.s32 %s10, 2
    %s23 = sadd.s32 1, %s18
    %p24 = scmp.ge.s32.totalorder %s23, 1
    %s25 = scalar_select %p24, 0, %s23
    %s26 = sadd.s32 1, %s17
    %s27 = scalar_select %p24, %s26, %s17
    %p28 = scmp.ge.s32.totalorder %s27, 2
    %s29 = scalar_select %p28, 0, %s27
    %s30 = ssub.s32 %s17, %s29
    %s31 = ssub.s32 %s18, %s25
    %s32 = sor.u32 %s30, %s31
    %p33 = scmp.eq.s32.totalorder %s32, 0
    %s35 = sadd.s32 %s34, 1
    %s36 = scalar_select %p33, %s34, %s35
    %p39 = pneg %p33
    %p40 = scmp.eq.s32.totalorder %s10, 1
    %p41 = por %p39, %p40
    %p42 = scmp.ne.s32.totalorder %s34, %s37
    %p43 = scmp.eq.s32.totalorder %s10, 0
    %p44 = por %p42, %p43
    %p45 = scmp.ne.s32.totalorder %s34, %s37
    %p46 = scmp.eq.s32.totalorder %s15, 1
    %p47 = por %p45, %p46
    %p48 = scmp.ne.s32.totalorder %s37, %s38
    %p49 = scmp.eq.s32.totalorder %s15, 0
    %p50 = por %p48, %p49
    %p51 = scmp.ne.s32.totalorder %s37, %s38
    %p52 = scmp.eq.s32.totalorder %s16, 1
    %p53 = por %p51, %p52
    %p55 = scmp.ne.s32.totalorder %s38, %s54
    %p56 = scmp.eq.s32.totalorder %s16, 0
    %p57 = por %p55, %p56
    %s59 = sadd.s32 %s58, 1
    %p62 = scmp.eq.s32.totalorder %s10, 1
    %p63 = scmp.ne.s32.totalorder %s58, %s60
    %p64 = scmp.eq.s32.totalorder %s10, 0
    %p65 = por %p63, %p64
    %p66 = scmp.ne.s32.totalorder %s58, %s60
    %p67 = scmp.eq.s32.totalorder %s15, 1
    %p68 = por %p66, %p67
    %p69 = scmp.ne.s32.totalorder %s60, %s61
    %p70 = scmp.eq.s32.totalorder %s15, 0
    %p71 = por %p69, %p70
    %p72 = scmp.ne.s32.totalorder %s60, %s61
    %p73 = scmp.eq.s32.totalorder %s16, 1
    %p74 = por %p72, %p73
    %p76 = scmp.ne.s32.totalorder %s61, %s75
    %p77 = scmp.eq.s32.totalorder %s16, 0
    %p78 = por %p76, %p77
    %s80 = sadd.s32 %s79, 1
    %p83 = scmp.eq.s32.totalorder %s10, 1
    %p84 = scmp.ne.s32.totalorder %s79, %s81
    %p85 = scmp.eq.s32.totalorder %s10, 0
    %p86 = por %p84, %p85
    %p87 = scmp.ne.s32.totalorder %s79, %s81
    %p88 = scmp.eq.s32.totalorder %s15, 1
    %p89 = por %p87, %p88
    %p90 = scmp.ne.s32.totalorder %s81, %s82
    %p91 = scmp.eq.s32.totalorder %s15, 0
    %p92 = por %p90, %p91
    %p93 = scmp.ne.s32.totalorder %s81, %s82
    %p94 = scmp.eq.s32.totalorder %s16, 1
    %p95 = por %p93, %p94
    %p97 = scmp.ne.s32.totalorder %s82, %s96
    %p98 = scmp.eq.s32.totalorder %s16, 0
    %p99 = por %p97, %p98
    %s101 = sadd.s32 %s100, 1
    %p104 = scmp.eq.s32.totalorder %s10, 1
    %p105 = scmp.ne.s32.totalorder %s100, %s102
    %p106 = scmp.eq.s32.totalorder %s10, 0
    %p107 = por %p105, %p106
    %p108 = scmp.ne.s32.totalorder %s100, %s102
    %p109 = scmp.eq.s32.totalorder %s15, 1
    %p110 = por %p108, %p109
    %p111 = scmp.ne.s32.totalorder %s102, %s103
    %p112 = scmp.eq.s32.totalorder %s15, 0
    %p113 = por %p111, %p112
    %p114 = scmp.ne.s32.totalorder %s102, %s103
    %p115 = scmp.eq.s32.totalorder %s16, 1
    %p116 = por %p114, %p115
    %p118 = scmp.ne.s32.totalorder %s103, %s117
    %p119 = scmp.eq.s32.totalorder %s16, 0
    %p120 = por %p118, %p119
    %s121 = ssub.s32 %s17, %s29
    %s122 = ssub.s32 %s18, %s25
    %s123 = sor.u32 %s121, %s122
    %p124 = scmp.eq.s32.totalorder %s123, 0
    %s126 = sadd.s32 %s125, 1
    %s127 = scalar_select %p124, %s125, %s126
    %p130 = pneg %p124
    %p131 = scmp.eq.s32.totalorder %s10, 1
    %p132 = por %p130, %p131
    %p133 = scmp.ne.s32.totalorder %s125, %s128
    %p134 = scmp.eq.s32.totalorder %s10, 0
    %p135 = por %p133, %p134
    %p136 = scmp.ne.s32.totalorder %s125, %s128
    %p137 = scmp.eq.s32.totalorder %s15, 1
    %p138 = por %p136, %p137
    %p139 = scmp.ne.s32.totalorder %s128, %s129
    %p140 = scmp.eq.s32.totalorder %s15, 0
    %p141 = por %p139, %p140
    %p142 = scmp.ne.s32.totalorder %s128, %s129
    %p143 = scmp.eq.s32.totalorder %s16, 1
    %p144 = por %p142, %p143
    %p146 = scmp.ne.s32.totalorder %s129, %s145
    %p147 = scmp.eq.s32.totalorder %s16, 0
    %p148 = por %p146, %p147
    %p149 = scmp.le.s32.totalorder 1, %s10
    %p150 = scmp.lt.s32.totalorder %s10, 3
    %p151 = pnand %p149, %p150
    %p152 = pneg %p151
    // Predicated region
    $region9: #{tpu_custom_call.1} parent=5 // pred_check
      _
    $region10: #{tpu_custom_call.1} parent=5 // pred_check_branch
      %154 = sbr.rel (%p151) target = $region12
    $region11: #{tpu_custom_call.1} parent=5 // pred_region
      %s155 = ssub.s32 %s10, 1
      // Predicated region
      $region13: #{tpu_custom_call.1} parent=11 // pred_check
        %p156 = pneg %p71
      $region14: #{tpu_custom_call.1} parent=11 // pred_check_branch
        %158 = sbr.rel (%p156) target = $region16
      $region15: #{tpu_custom_call.1} parent=11 // pred_region
        _
      $region16: #{tpu_custom_call.1} parent=11 // pred_fallthru
        _
      // Predicated region
      $region17: #{tpu_custom_call.1} parent=11 // pred_check
        %p159 = pneg %p92
      $region18: #{tpu_custom_call.1} parent=11 // pred_check_branch
        %161 = sbr.rel (%p159) target = $region20
      $region19: #{tpu_custom_call.1} parent=11 // pred_region
        _
      $region20: #{tpu_custom_call.1} parent=11 // pred_fallthru
        _
      // Predicated region
      $region21: #{tpu_custom_call.1} parent=11 // pred_check
        %p162 = pneg %p113
      $region22: #{tpu_custom_call.1} parent=11 // pred_check_branch
        %164 = sbr.rel (%p162) target = $region24
      $region23: #{tpu_custom_call.1} parent=11 // pred_region
        _
      $region24: #{tpu_custom_call.1} parent=11 // pred_fallthru
        _
    $region12: #{tpu_custom_call.1} parent=5 // pred_fallthru
      _
    %p165 = scmp.lt.s32.totalorder %s10, 2
    // Predicated region
    $region25: #{tpu_custom_call.1} parent=5 // pred_check
      %p166 = pneg %p165
    $region26: #{tpu_custom_call.1} parent=5 // pred_check_branch
      %168 = sbr.rel (%p166) target = $region28
    $region27: #{tpu_custom_call.1} parent=5 // pred_region
      // Predicated region
      $region29: #{tpu_custom_call.1} parent=27 // pred_check
        %p169 = pneg %p44
      $region30: #{tpu_custom_call.1} parent=27 // pred_check_branch
        %171 = sbr.rel (%p169) target = $region32
      $region31: #{tpu_custom_call.1} parent=27 // pred_region
        %p172 = scmp.lt.s32.totalorder %s17, 1
        %s173 = scalar_select %p172, %s17, 1
        %p174 = scmp.lt.s32.totalorder %s18, 0
        %s175 = scalar_select %p174, %s18, 0
        %s176 = smul.addr %s173, 3
        %s177 = sadd.s32 %s175, %s176
        %s178 = smul.addr %s177, 4
        %s179 = scalar_lea.vmem %s0, %s178
      $region32: #{tpu_custom_call.1} parent=27 // pred_fallthru
        _
    $region28: #{tpu_custom_call.1} parent=5 // pred_fallthru
      _
    %p180 = scmp.le.s32.totalorder 1, %s10
    %p181 = scmp.lt.s32.totalorder %s10, 3
    %p182 = pnand %p180, %p181
    %p183 = pneg %p182
    // Predicated region
    $region33: #{tpu_custom_call.1} parent=5 // pred_check
      _
    $region34: #{tpu_custom_call.1} parent=5 // pred_check_branch
      %185 = sbr.rel (%p182) target = $region36
    $region35: #{tpu_custom_call.1} parent=5 // pred_region
      %s186 = ssub.s32 %s10, 1
      %p187 = scmp.lt.s32.totalorder %s19, 1
      %s188 = scalar_select %p187, %s19, 1
      %p189 = scmp.lt.s32.totalorder %s20, 0
      %s190 = scalar_select %p189, %s20, 0
      %s191 = smul.addr %s188, 3
      %s192 = sadd.s32 %s190, %s191
      %s193 = smul.addr %s192, 4
      %s194 = scalar_lea.vmem %s0, %s193
      %p195 = pneg %p50
      %p196 = pneg %p47
      %p197 = pneg %p71
      %p198 = pneg %p68
      %p199 = pneg %p92
      %p200 = pneg %p89
      %p201 = pneg %p113
      %p202 = pneg %p110
      %p203 = pneg %p141
      %p204 = pneg %p138
      %p205 = scmp.lt.s32.totalorder %s19, 1
      %s206 = scalar_select %p205, %s19, 1
      %p207 = scmp.lt.s32.totalorder %s20, 0
      %s208 = scalar_select %p207, %s20, 0
      %s209 = smul.addr %s206, 4
      %s210 = sadd.s32 %s208, %s209
      %s211 = smul.addr %s210, 8
      %s212 = scalar_lea.vmem %s4, %s211
      %p213 = scmp.lt.s32.totalorder %s19, 1
      %s214 = scalar_select %p213, %s19, 1
      %p215 = scmp.lt.s32.totalorder %s20, 0
      %s216 = scalar_select %p215, %s20, 0
      %s217 = smul.addr %s214, 3
      %s218 = sadd.s32 %s216, %s217
      %s219 = smul.addr %s218, 4
      %s220 = scalar_lea.vmem %s0, %s219
      %p221 = scmp.lt.s32.totalorder %s19, 1
      %s222 = scalar_select %p221, %s19, 1
      %p223 = scmp.lt.s32.totalorder %s20, 0
      %s224 = scalar_select %p223, %s20, 0
      %s225 = smul.addr %s222, 4
      %s226 = sadd.s32 %s224, %s225
      %s227 = smul.addr %s226, 8
      %s228 = scalar_lea.vmem %s4, %s227
      %v230 = vld [vmem:[%s1] sm:$0xf]
      %v231 = vld [vmem:[%s1 + $0x4] sm:$0xf]
      %v232 = vld [vmem:[%s1 + $0x8] sm:$0xf]
      %v233 = vld [vmem:[%s1 + $0xc] sm:$0xf]
      %v234 = vld [vmem:[%s220] sm:$0xf]
      %v235 = vld [vmem:[%s220 + $0x4] sm:$0xf]
      %v236 = vld [vmem:[%s220 + $0x8] sm:$0x3]
      %v241 = vunpack.c.l.b16 %v230
      %v242 = vunpack.c.l.b16 %v231
      %v243 = vunpack.c.l.b16 %v232
      %v244 = vunpack.c.l.b16 %v233
      %v245 = vpack.c.b16 %v242, %v241
      %v246 = vpack.c.b16 %v244, %v243
      %v250 = vunpack.c.l.b16 %v234
      %v251 = vunpack.c.l.b16 %v235
      %v252 = vunpack.c.l.b16 %v236
      %v253 = vpack.c.b16 %v251, %v250
      %v254 = vpack.c.b16 %v252, %v252
      %vm256 = vcmask 162816
      %v258 = vsel %vm256, %v245, 0
      %v261 = vsel %vm256, %v246, 0
      %vm263 = vcmask 1041408
      %v265 = vsel %vm263, %v254, 0
      %267 = vmatpush.bf16.msra.mxu0 0
      %268 = vmatpush.bf16.msra.mxu0 0
      %269 = vmatpush.bf16.msra.mxu0 0
      %270 = vmatpush.bf16.msra.mxu0 0
      %271 = vmatpush.bf16.msra.mxu0 0
      %272 = vmatpush.bf16.msra.mxu0 0
      %273 = vmatpush.bf16.msra.mxu0 %v265
      %274 = vmatpush.bf16.msra.mxu0 %v253
      %275 = vmatmul.bf16.gmra.mxu0 %v258
      %v276 = vpop.f32.mrf.mxu0
      %v277 = vadd.f32 0.0, %v276
      %v278 = vpop.f32.mrf.mxu0
      %v279 = vadd.f32 0.0, %v278
      %280 = vmatmul.bf16.gmra.mxu0 %v261
      %v281 = vpop.f32.mrf.mxu0
      %v282 = vadd.f32 0.0, %v281
      %v283 = vpop.f32.mrf.mxu0
      %v284 = vadd.f32 0.0, %v283
      %285 = vdwg.mxu0
      %v286 = vld [vmem:[%s2] sm:$0xff]
      %v287 = vld [vmem:[%s2 + $0x8] sm:$0xff]
      %v288 = vld [vmem:[%s2 + $0x10] sm:$0xff]
      %v289 = vld [vmem:[%s2 + $0x18] sm:$0xff]
      %291 = vset.pattern.permute.xlu0 0
      %292 = vperm.xlu0 %291, %v286
      %v293 = vpop.permute.xlu0 %292
      %296 = vset.pattern.permute.xlu0 0
      %297 = vperm.xlu0 %296, %v287
      %v298 = vpop.permute.xlu0 %297
      %301 = vset.pattern.permute.xlu0 0
      %302 = vperm.xlu0 %301, %v288
      %v303 = vpop.permute.xlu0 %302
      %306 = vset.pattern.permute.xlu0 0
      %307 = vperm.xlu0 %306, %v289
      %v308 = vpop.permute.xlu0 %307
      %v310 = vmul.f32 %v277, %v293
      %v311 = vmul.f32 %v279, %v298
      %v312 = vmul.f32 %v282, %v303
      %v313 = vmul.f32 %v284, %v308
      %v314 = vld [vmem:[%s3] sm:$0xff]
      %v315 = vld [vmem:[%s3 + $0x8] sm:$0xff]
      %v316 = vld [vmem:[%s3 + $0x10] sm:$0xff]
      %v317 = vld [vmem:[%s3 + $0x18] sm:$0xff]
      %319 = vset.pattern.permute.xlu0 0
      %320 = vperm.xlu0 %319, %v314
      %v321 = vpop.permute.xlu0 %320
      %324 = vset.pattern.permute.xlu0 0
      %325 = vperm.xlu0 %324, %v315
      %v326 = vpop.permute.xlu0 %325
      %329 = vset.pattern.permute.xlu0 0
      %330 = vperm.xlu0 %329, %v316
      %v331 = vpop.permute.xlu0 %330
      %334 = vset.pattern.permute.xlu0 0
      %335 = vperm.xlu0 %334, %v317
      %v336 = vpop.permute.xlu0 %335
      %v338 = vadd.f32 %v310, %v321
      %v339 = vadd.f32 %v311, %v326
      %v340 = vadd.f32 %v312, %v331
      %v341 = vadd.f32 %v313, %v336
      %v342 = vmax.f32 %v338, 0.0
      %v343 = vmax.f32 %v339, 0.0
      %v344 = vmax.f32 %v340, 0.0
      %v345 = vmax.f32 %v341, 0.0
      %vm346 = vcmask 130048
      %347 = vst.msk [vmem:[%s228] sm:$0xff] %vm346, %v342
      %348 = vst.msk [vmem:[%s228 + $0x8] sm:$0xff] %vm346, %v343
      %349 = vst.msk [vmem:[%s228 + $0x10] sm:$0xff] %vm346, %v344
      %350 = vst.msk [vmem:[%s228 + $0x18] sm:$0xff] %vm346, %v345
      %p351 = scmp.lt.s32.totalorder %s19, 1
      %s352 = scalar_select %p351, %s19, 1
      %p353 = scmp.lt.s32.totalorder %s20, 0
      %s354 = scalar_select %p353, %s20, 0
      %s355 = smul.addr %s352, 4
      %s356 = sadd.s32 %s354, %s355
      %s357 = smul.addr %s356, 8
      %s358 = scalar_lea.vmem %s4, %s357
      // Predicated region
      $region37: #{tpu_custom_call.1} parent=35 // pred_check
        %p359 = pneg %p138
      $region38: #{tpu_custom_call.1} parent=35 // pred_check_branch
        %361 = sbr.rel (%p359) target = $region40
      $region39: #{tpu_custom_call.1} parent=35 // pred_region
        _
      $region40: #{tpu_custom_call.1} parent=35 // pred_fallthru
        _
    $region36: #{tpu_custom_call.1} parent=5 // pred_fallthru
      _
    %p362 = scmp.le.s32.totalorder 2, %s10
    // Predicated region
    $region41: #{tpu_custom_call.1} parent=5 // pred_check
      %p363 = pneg %p362
    $region42: #{tpu_custom_call.1} parent=5 // pred_check_branch
      %365 = sbr.rel (%p363) target = $region44
    $region43: #{tpu_custom_call.1} parent=5 // pred_region
      %s366 = ssub.s32 %s10, 2
      // Predicated region
      $region45: #{tpu_custom_call.1} parent=43 // pred_check
        %p367 = pneg %p144
      $region46: #{tpu_custom_call.1} parent=43 // pred_check_branch
        %369 = sbr.rel (%p367) target = $region48
      $region47: #{tpu_custom_call.1} parent=43 // pred_region
        %p370 = scmp.lt.s32.totalorder %s21, 1
        %s371 = scalar_select %p370, %s21, 1
        %p372 = scmp.lt.s32.totalorder %s22, 0
        %s373 = scalar_select %p372, %s22, 0
        %s374 = smul.addr %s371, 4
        %s375 = sadd.s32 %s373, %s374
        %s376 = smul.addr %s375, 8
        %s377 = scalar_lea.vmem %s4, %s376
      $region48: #{tpu_custom_call.1} parent=43 // pred_fallthru
        _
    $region44: #{tpu_custom_call.1} parent=5 // pred_fallthru
      _
  $region6: #{tpu_custom_call.1} parent=0 // loop_footer
    %s14 = sadd.s32 1, %s10
  $region7: #{tpu_custom_call.1} parent=0 // loop_footer_branch
    %9 = sbr.rel target = $region3
  $region8: #{tpu_custom_call.1} parent=0 // loop_exit
    _

</llo_original>
